<compile_context>
chip_gen: v6e
topology: v6e:2x2x1
jax: 0.10.0
libtpu: 0.0.40
codegen_flags: <defaults>
</compile_context>

<pallas_src>
import functools

import jax
import jax.numpy as jnp
from jax.experimental import pallas as pl
from jax.experimental.pallas import tpu as pltpu


def fire_kernel(x_ref, wsq_ref, bsq_ref, wcb_ref, bcb_ref, mask_ref, out_ref, *, W):
    # x_ref:    (1, Cin, L)          L = H*W, flat spatial on lanes
    # wsq_ref:  (Csq, Cin)           bsq_ref: (Csq, 1)
    # wcb_ref:  (Ce1+Ce3, 9*Csq)     combined expand weight, center tap first
    # bcb_ref:  (Ce1+Ce3, 1)         combined expand bias [b_e1 ; b_e3]
    # mask_ref: (2, L)  row 0: valid when x>=1 (dx=0); row 1: x<=W-2 (dx=2)
    # out_ref:  (1, Ce1+Ce3, L)      fused [expand1x1 ; expand3x3] output
    L = x_ref.shape[2]

    x = x_ref[0]                                                # (Cin, L)

    # --- squeeze 1x1 + ReLU (interior pixels only, lane-dense) ---
    s = jnp.maximum(
        jnp.dot(wsq_ref[...], x, preferred_element_type=jnp.float32)
        + bsq_ref[...], 0.0)                                    # (Csq, L)

    # --- build im2col for the 3x3 taps (center tap first) ---
    # Zero-extend the flat activation by P = W+1 lanes on each side so every
    # 3x3 tap is a static lane-slice; reads that fall off the top/bottom rows
    # land in the zero extension, and cross-row leakage in the x direction is
    # removed by the two column masks (dx = 0 and dx = 2 taps).
    P = W + 1
    zpad = jnp.zeros((s.shape[0], P), jnp.float32)
    s_ext = jnp.concatenate([zpad, s, zpad], axis=1)            # (Csq, L + 2P)

    m_left = mask_ref[0:1, :]                                   # (1, L)
    m_right = mask_ref[1:2, :]                                  # (1, L)

    taps = [s]                                                  # center tap (dy=1, dx=1)
    for dy in range(3):
        for dx in range(3):
            if dy == 1 and dx == 1:
                continue
            off = (dy - 1) * W + (dx - 1)
            t = s_ext[:, P + off:P + off + L]                   # (Csq, L)
            if dx == 0:
                t = t * m_left
            elif dx == 2:
                t = t * m_right
            taps.append(t)
    im2col = jnp.concatenate(taps, axis=0)                      # (9*Csq, L)

    # --- fused expand1x1 + expand3x3: ONE matmul, one bias+ReLU, one store ---
    out = jnp.maximum(
        jnp.dot(wcb_ref[...], im2col, preferred_element_type=jnp.float32)
        + bcb_ref[...], 0.0)                                    # (Ce1+Ce3, L)
    out_ref[0] = out.astype(out_ref.dtype)


def fire_forward(x_nchw, params):
    """Fire forward. x_nchw: (N, Cin, H, W) float32. Returns (N, Ce1+Ce3, H, W)."""
    wsq_t, bsq, we1_t, be1, we3_t, be3 = params   # torch-convention (OIHW) weights
    N, Cin, H, W = x_nchw.shape
    Csq = wsq_t.shape[0]
    Ce1 = we1_t.shape[0]
    Ce3 = we3_t.shape[0]
    Ctot = Ce1 + Ce3
    L = H * W

    # Kernel-friendly weight layouts (cheap one-time XLA reshapes on HBM).
    wsq_k = wsq_t[:, :, 0, 0]                                          # (Csq, Cin)
    bsq_k = bsq.reshape(Csq, 1)

    we1_k = we1_t[:, :, 0, 0]                                          # (Ce1, Csq)
    # 3x3 weight: tap-major (dy, dx), channel-minor columns ...
    we3_tap = jnp.transpose(we3_t, (0, 2, 3, 1)).reshape(Ce3, 9 * Csq)
    # ... then move the center tap (dy=1, dx=1) first to match the in-kernel im2col.
    c0 = 4 * Csq
    we3_k = jnp.concatenate(
        [we3_tap[:, c0:c0 + Csq], we3_tap[:, :c0], we3_tap[:, c0 + Csq:]], axis=1)
    # Combined expand weight/bias: rows [W_e1 | 0] produce expand1x1 (the
    # center-tap columns of im2col are exactly the squeeze activation).
    w_comb = jnp.concatenate(
        [jnp.concatenate([we1_k, jnp.zeros((Ce1, 8 * Csq), we1_k.dtype)], axis=1),
         we3_k], axis=0)                                               # (Ctot, 9*Csq)
    b_comb = jnp.concatenate([be1, be3]).reshape(Ctot, 1)              # (Ctot, 1)

    # Column-validity masks for the 3x3 edge taps (constants, computed once).
    xs = jnp.arange(L, dtype=jnp.int32) % W
    col_masks = jnp.stack([(xs >= 1).astype(jnp.float32),
                           (xs <= W - 2).astype(jnp.float32)], axis=0)  # (2, L)

    # Free metadata reshape: NCHW -> (N, Cin, H*W); no pad, no transpose.
    x_flat = x_nchw.reshape(N, Cin, L)

    out = pl.pallas_call(
        functools.partial(fire_kernel, W=W),
        out_shape=jax.ShapeDtypeStruct((N, Ctot, L), jnp.float32),
        grid_spec=pltpu.PrefetchScalarGridSpec(
            num_scalar_prefetch=0,
            grid=(N,),
            in_specs=[
                pl.BlockSpec((1, Cin, L), lambda n: (n, 0, 0)),
                pl.BlockSpec((Csq, Cin), lambda n: (0, 0)),
                pl.BlockSpec((Csq, 1), lambda n: (0, 0)),
                pl.BlockSpec((Ctot, 9 * Csq), lambda n: (0, 0)),
                pl.BlockSpec((Ctot, 1), lambda n: (0, 0)),
                pl.BlockSpec((2, L), lambda n: (0, 0)),
            ],
            out_specs=pl.BlockSpec((1, Ctot, L), lambda n: (n, 0, 0)),
        ),
        compiler_params=pltpu.CompilerParams(
            dimension_semantics=("parallel",)),   # batch axis -> megacore-friendly
    )(x_flat, wsq_k, bsq_k, w_comb, b_comb, col_masks)

    # Free contiguous reshape back to NCHW (fused channel concat already done).
    return out.reshape(N, Ctot, H, W)


def fire_reference(x_nchw, params):
    """Pure-JAX reference with torch-convention (NCHW / OIHW) convs."""
    wsq_t, bsq, we1_t, be1, we3_t, be3 = params
    dn = ("NCHW", "OIHW", "NCHW")

    def conv(x, w, b, pad):
        y = jax.lax.conv_general_dilated(x, w, window_strides=(1, 1),
                                         padding=pad, dimension_numbers=dn)
        return y + b.reshape(1, -1, 1, 1)

    s = jax.nn.relu(conv(x_nchw, wsq_t, bsq, "VALID"))
    o1 = jax.nn.relu(conv(s, we1_t, be1, "VALID"))
    o3 = jax.nn.relu(conv(s, we3_t, be3, "SAME"))
    return jnp.concatenate([o1, o3], axis=1)


if __name__ == "__main__":
    # Fire(inplanes=4, squeeze_planes=4, expand1x1_planes=8, expand3x3_planes=8)
    N, Cin, H, W = 2, 4, 16, 16
    Csq, Ce1, Ce3 = 4, 8, 8

    key = jax.random.PRNGKey(0)
    kx, k1, k2, k3, k4, k5, k6 = jax.random.split(key, 7)

    x = jax.random.normal(kx, (N, Cin, H, W), jnp.float32)
    # Deterministic synthetic parameters (torch Conv2d weight layout OIHW).
    wsq = 0.2 * jax.random.normal(k1, (Csq, Cin, 1, 1), jnp.float32)
    bsq = 0.1 * jax.random.normal(k2, (Csq,), jnp.float32)
    we1 = 0.2 * jax.random.normal(k3, (Ce1, Csq, 1, 1), jnp.float32)
    be1 = 0.1 * jax.random.normal(k4, (Ce1,), jnp.float32)
    we3 = 0.2 * jax.random.normal(k5, (Ce3, Csq, 3, 3), jnp.float32)
    be3 = 0.1 * jax.random.normal(k6, (Ce3,), jnp.float32)
    params = (wsq, bsq, we1, be1, we3, be3)

    out = jax.block_until_ready(fire_forward(x, params))
    ref = jax.block_until_ready(fire_reference(x, params))

    assert out.shape == (N, Ce1 + Ce3, H, W), out.shape
    assert jnp.allclose(out, ref, atol=1e-4, rtol=1e-4), \
        float(jnp.max(jnp.abs(out - ref)))
    print("KERNEL_OK")
</pallas_src>

<mosaic_0001>
module attributes {stable_mosaic.version = 11 : i64} {
  func.func @fire_kernel(%arg0: i32, %arg1: memref<1x4x256xf32, #tpu.memory_space<vmem>>, %arg2: memref<4x4xf32, #tpu.memory_space<vmem>>, %arg3: memref<4x1xf32, #tpu.memory_space<vmem>>, %arg4: memref<16x36xf32, #tpu.memory_space<vmem>>, %arg5: memref<16x1xf32, #tpu.memory_space<vmem>>, %arg6: memref<2x256xf32, #tpu.memory_space<vmem>>, %arg7: memref<1x16x256xf32, #tpu.memory_space<vmem>>) attributes {dimension_semantics = [#tpu.dimension_semantics<parallel>], iteration_bounds = array<i64: 2>, scalar_prefetch = 0 : i64, scratch_operands = 0 : i64, tpu.core_type = #tpu.core_type<tc>, window_params = [{transform_indices = @transform_0, window_bounds = array<i64: 1, 4, 256>}, {pipeline_mode = #tpu.pipeline_mode<synchronous>, transform_indices = @transform_1, window_bounds = array<i64: 4, 4>}, {pipeline_mode = #tpu.pipeline_mode<synchronous>, transform_indices = @transform_2, window_bounds = array<i64: 4, 1>}, {pipeline_mode = #tpu.pipeline_mode<synchronous>, transform_indices = @transform_3, window_bounds = array<i64: 16, 36>}, {pipeline_mode = #tpu.pipeline_mode<synchronous>, transform_indices = @transform_4, window_bounds = array<i64: 16, 1>}, {pipeline_mode = #tpu.pipeline_mode<synchronous>, transform_indices = @transform_5, window_bounds = array<i64: 2, 256>}, {transform_indices = @transform_6, window_bounds = array<i64: 1, 16, 256>}]} {
    %c0 = arith.constant 0 : index
    %c0_0 = arith.constant 0 : index
    %c0_1 = arith.constant 0 : index
    %0 = vector.load %arg1[%c0, %c0_0, %c0_1] : memref<1x4x256xf32, #tpu.memory_space<vmem>>, vector<1x4x256xf32>
    %1 = vector.shape_cast %0 : vector<1x4x256xf32> to vector<4x256xf32>
    %c0_2 = arith.constant 0 : index
    %c0_3 = arith.constant 0 : index
    %2 = vector.load %arg2[%c0_2, %c0_3] : memref<4x4xf32, #tpu.memory_space<vmem>>, vector<4x4xf32>
    %cst = arith.constant dense<0.000000e+00> : vector<4x256xf32>
    %3 = tpu.matmul %2, %1, %cst {dimension_numbers = #tpu.dot_dimension_numbers<[1], [0], [0], [1], [0, 0, 1, 1], [], []>} : vector<4x4xf32>, vector<4x256xf32>, vector<4x256xf32> -> vector<4x256xf32>
    %c0_4 = arith.constant 0 : index
    %c0_5 = arith.constant 0 : index
    %4 = vector.load %arg3[%c0_4, %c0_5] : memref<4x1xf32, #tpu.memory_space<vmem>>, vector<4x1xf32>
    %5 = vector.broadcast %4 : vector<4x1xf32> to vector<4x256xf32>
    %6 = arith.addf %3, %5 : vector<4x256xf32>
    %cst_6 = arith.constant 0.000000e+00 : f32
    %7 = vector.broadcast %cst_6 : f32 to vector<4x256xf32>
    %8 = arith.maximumf %6, %7 : vector<4x256xf32>
    %cst_7 = arith.constant 0.000000e+00 : f32
    %9 = vector.broadcast %cst_7 : f32 to vector<4x17xf32>
    %10 = tpu.concatenate %9, %8, %9 in 1 : vector<4x17xf32>, vector<4x256xf32>, vector<4x17xf32> -> vector<4x290xf32>
    %c0_8 = arith.constant 0 : index
    %c0_9 = arith.constant 0 : index
    %11 = vector.load %arg6[%c0_8, %c0_9] : memref<2x256xf32, #tpu.memory_space<vmem>>, vector<1x256xf32>
    %c1 = arith.constant 1 : index
    %c0_10 = arith.constant 0 : index
    %12 = vector.load %arg6[%c1, %c0_10] : memref<2x256xf32, #tpu.memory_space<vmem>>, vector<1x256xf32>
    %13 = vector.extract_strided_slice %10 {offsets = [0, 0], sizes = [4, 256], strides = [1, 1]} : vector<4x290xf32> to vector<4x256xf32>
    %14 = vector.broadcast %11 : vector<1x256xf32> to vector<4x256xf32>
    %15 = arith.mulf %13, %14 : vector<4x256xf32>
    %16 = vector.extract_strided_slice %10 {offsets = [0, 1], sizes = [4, 256], strides = [1, 1]} : vector<4x290xf32> to vector<4x256xf32>
    %17 = vector.extract_strided_slice %10 {offsets = [0, 2], sizes = [4, 256], strides = [1, 1]} : vector<4x290xf32> to vector<4x256xf32>
    %18 = vector.broadcast %12 : vector<1x256xf32> to vector<4x256xf32>
    %19 = arith.mulf %17, %18 : vector<4x256xf32>
    %20 = vector.extract_strided_slice %10 {offsets = [0, 16], sizes = [4, 256], strides = [1, 1]} : vector<4x290xf32> to vector<4x256xf32>
    %21 = vector.broadcast %11 : vector<1x256xf32> to vector<4x256xf32>
    %22 = arith.mulf %20, %21 : vector<4x256xf32>
    %23 = vector.extract_strided_slice %10 {offsets = [0, 18], sizes = [4, 256], strides = [1, 1]} : vector<4x290xf32> to vector<4x256xf32>
    %24 = vector.broadcast %12 : vector<1x256xf32> to vector<4x256xf32>
    %25 = arith.mulf %23, %24 : vector<4x256xf32>
    %26 = vector.extract_strided_slice %10 {offsets = [0, 32], sizes = [4, 256], strides = [1, 1]} : vector<4x290xf32> to vector<4x256xf32>
    %27 = vector.broadcast %11 : vector<1x256xf32> to vector<4x256xf32>
    %28 = arith.mulf %26, %27 : vector<4x256xf32>
    %29 = vector.extract_strided_slice %10 {offsets = [0, 33], sizes = [4, 256], strides = [1, 1]} : vector<4x290xf32> to vector<4x256xf32>
    %30 = vector.extract_strided_slice %10 {offsets = [0, 34], sizes = [4, 256], strides = [1, 1]} : vector<4x290xf32> to vector<4x256xf32>
    %31 = vector.broadcast %12 : vector<1x256xf32> to vector<4x256xf32>
    %32 = arith.mulf %30, %31 : vector<4x256xf32>
    %33 = tpu.concatenate %8, %15, %16, %19, %22, %25, %28, %29, %32 in 0 : vector<4x256xf32>, vector<4x256xf32>, vector<4x256xf32>, vector<4x256xf32>, vector<4x256xf32>, vector<4x256xf32>, vector<4x256xf32>, vector<4x256xf32>, vector<4x256xf32> -> vector<36x256xf32>
    %c0_11 = arith.constant 0 : index
    %c0_12 = arith.constant 0 : index
    %34 = vector.load %arg4[%c0_11, %c0_12] : memref<16x36xf32, #tpu.memory_space<vmem>>, vector<16x36xf32>
    %cst_13 = arith.constant dense<0.000000e+00> : vector<16x256xf32>
    %35 = tpu.matmul %34, %33, %cst_13 {dimension_numbers = #tpu.dot_dimension_numbers<[1], [0], [0], [1], [0, 0, 1, 1], [], []>} : vector<16x36xf32>, vector<36x256xf32>, vector<16x256xf32> -> vector<16x256xf32>
    %c0_14 = arith.constant 0 : index
    %c0_15 = arith.constant 0 : index
    %36 = vector.load %arg5[%c0_14, %c0_15] : memref<16x1xf32, #tpu.memory_space<vmem>>, vector<16x1xf32>
    %37 = vector.broadcast %36 : vector<16x1xf32> to vector<16x256xf32>
    %38 = arith.addf %35, %37 : vector<16x256xf32>
    %cst_16 = arith.constant 0.000000e+00 : f32
    %39 = vector.broadcast %cst_16 : f32 to vector<16x256xf32>
    %40 = arith.maximumf %38, %39 : vector<16x256xf32>
    %c0_17 = arith.constant 0 : index
    %c0_18 = arith.constant 0 : index
    %c0_19 = arith.constant 0 : index
    %41 = vector.load %arg7[%c0_17, %c0_18, %c0_19] : memref<1x16x256xf32, #tpu.memory_space<vmem>>, vector<1x16x256xf32>
    %42 = vector.shape_cast %41 : vector<1x16x256xf32> to vector<16x256xf32>
    %43 = vector.shape_cast %40 : vector<16x256xf32> to vector<1x16x256xf32>
    tpu.vector_store %arg7[%c0_17, %c0_18, %c0_19], %43 {strides = array<i32>} : memref<1x16x256xf32, #tpu.memory_space<vmem>>, vector<1x16x256xf32>,
    return
  }
  func.func @transform_0(%arg0: i32) -> (i32, i32, i32) {
    %c0_i32 = arith.constant 0 : i32
    %c0_i32_0 = arith.constant 0 : i32
    %c0_i32_1 = arith.constant 0 : i32
    return %arg0, %c0_i32, %c0_i32_0 : i32, i32, i32
  }
  func.func @transform_1(%arg0: i32) -> (i32, i32) {
    %c0_i32 = arith.constant 0 : i32
    %c0_i32_0 = arith.constant 0 : i32
    %c0_i32_1 = arith.constant 0 : i32
    return %c0_i32, %c0_i32_0 : i32, i32
  }
  func.func @transform_2(%arg0: i32) -> (i32, i32) {
    %c0_i32 = arith.constant 0 : i32
    %c0_i32_0 = arith.constant 0 : i32
    %c0_i32_1 = arith.constant 0 : i32
    return %c0_i32, %c0_i32_0 : i32, i32
  }
  func.func @transform_3(%arg0: i32) -> (i32, i32) {
    %c0_i32 = arith.constant 0 : i32
    %c0_i32_0 = arith.constant 0 : i32
    %c0_i32_1 = arith.constant 0 : i32
    return %c0_i32, %c0_i32_0 : i32, i32
  }
  func.func @transform_4(%arg0: i32) -> (i32, i32) {
    %c0_i32 = arith.constant 0 : i32
    %c0_i32_0 = arith.constant 0 : i32
    %c0_i32_1 = arith.constant 0 : i32
    return %c0_i32, %c0_i32_0 : i32, i32
  }
  func.func @transform_5(%arg0: i32) -> (i32, i32) {
    %c0_i32 = arith.constant 0 : i32
    %c0_i32_0 = arith.constant 0 : i32
    %c0_i32_1 = arith.constant 0 : i32
    return %c0_i32, %c0_i32_0 : i32, i32
  }
  func.func @transform_6(%arg0: i32) -> (i32, i32, i32) {
    %c0_i32 = arith.constant 0 : i32
    %c0_i32_0 = arith.constant 0 : i32
    %c0_i32_1 = arith.constant 0 : i32
    return %arg0, %c0_i32, %c0_i32_0 : i32, i32, i32
  }
}

</mosaic_0001>

<llo_original>
// kernel: tpu_custom_call.1
$region0: #{tpu_custom_call.1}
  #allocation0 [shape = 'u32[]', space=smem, size = 0x4, offset = 0x4, fixed_abs, tag = 'smem constant byte address 0x4 - core index']
  #allocation1 [shape = 'u32[144,128]{1,0:T(1,128)}', space=vmem, size = 0x12000, scoped, tag = 'internal scratch']
  %s0 = inlined_call_operand.vmem [shape: f32[2,4,256], index: 0, kind: input, shape index: {}]
  %s1 = inlined_call_operand.vmem [shape: f32[4,4], index: 1, kind: input, shape index: {}]
  %s2 = inlined_call_operand.vmem [shape: f32[4,1], index: 2, kind: input, shape index: {}]
  %s3 = inlined_call_operand.hbm [shape: f32[16,36], index: 3, kind: input, shape index: {}]
  %s4 = inlined_call_operand.vmem [shape: f32[16,1], index: 4, kind: input, shape index: {}]
  %s5 = inlined_call_operand.vmem [shape: f32[2,256], index: 5, kind: input, shape index: {}]
  %s6 = inlined_call_operand.hbm [shape: f32[2,16,256], index: 6, kind: output, shape index: {}]
  %s7 = sld [smem:[#allocation0]]
  $region61: #{tpu_custom_call.1} parent=0
    _
  %s9 = ssub.s32 1, %s7
  %s10 = scalar_select 0, %s9, %s7
  $region1: #{tpu_custom_call.1} parent=0
    #allocation2 [shape = 'u8[8192]{0}', space=vmem, size = 0x2000, scoped, tag = 'input window, operand 3, single buffered']
    #allocation3 [shape = 's32[2]{0}', space=sflag, size = 0x8, scoped, tag = 'scoped memory for tpu_custom_call.1']
    #allocation4 [shape = 's32[2]{0}', space=sflag, size = 0x8, scoped, tag = 'scoped memory for tpu_custom_call.1']
    #allocation5 [shape = 'u8[32768]{0}', space=vmem, size = 0x8000, scoped, tag = 'output window, operand 0']
    %11 = vsyncpa [#allocation3], 0
    %12 = vsyncpa [#allocation4], 0
    %s13 = scalar_lea.sflag [#allocation4], 1
    %14 = vsyncpa %s13, 0
    loop: start=0, step=1, limit=4
    $region2: #{tpu_custom_call.1} parent=1 // loop_pre_header
      _
    $region3: #{tpu_custom_call.1} parent=1 // loop_header
      %s16 = sphi 0, %s20
      %p17 = scmp.ge.s32.totalorder %s16, 4
      %s26 = sphi 0, %s28
      %s29 = sphi 0, %s26
      %s30 = sphi 0, %s29
      %s46 = sphi 0, %s30
      %s50 = sphi 0, %s50
      %s52 = sphi 0, %s50
      %s53 = sphi 0, %s52
      %s67 = sphi 0, %s53
      %s71 = sphi 0, %s71
      %s73 = sphi 0, %s71
      %s74 = sphi 0, %s73
      %s88 = sphi 0, %s74
      %s92 = sphi 0, %s92
      %s94 = sphi 0, %s92
      %s95 = sphi 0, %s94
      %s109 = sphi 0, %s95
      %s113 = sphi 0, %s113
      %s115 = sphi 0, %s113
      %s116 = sphi 0, %s115
      %s130 = sphi 0, %s116
      %s134 = sphi 0, %s134
      %s136 = sphi 0, %s134
      %s137 = sphi 0, %s136
      %s151 = sphi 0, %s137
      %s157 = sphi 0, %s159
      %s160 = sphi 0, %s157
      %s161 = sphi 0, %s160
      %s177 = sphi 0, %s161
    $region4: #{tpu_custom_call.1} parent=1 // loop_header_branch
      %19 = sbr.rel (%p17) target = $region8
    $region5: #{tpu_custom_call.1} parent=1 // loop_body
      %s21 = ssub.s32 %s16, 1
      %s22 = ssub.s32 %s16, 2
      %s23 = sadd.s32 %s16, 1
      %s24 = ssub.s32 %s16, %s23
      %p25 = scmp.eq.s32.totalorder %s24, 0
      %s27 = sadd.s32 %s26, 1
      %s28 = scalar_select %p25, %s26, %s27
      %p31 = pneg %p25
      %p32 = scmp.eq.s32.totalorder %s16, 1
      %p33 = por %p31, %p32
      %p34 = scmp.ne.s32.totalorder %s26, %s29
      %p35 = scmp.eq.s32.totalorder %s16, 0
      %p36 = por %p34, %p35
      %p37 = scmp.ne.s32.totalorder %s26, %s29
      %p38 = scmp.eq.s32.totalorder %s21, 1
      %p39 = por %p37, %p38
      %p40 = scmp.ne.s32.totalorder %s29, %s30
      %p41 = scmp.eq.s32.totalorder %s21, 0
      %p42 = por %p40, %p41
      %p43 = scmp.ne.s32.totalorder %s29, %s30
      %p44 = scmp.eq.s32.totalorder %s22, 1
      %p45 = por %p43, %p44
      %p47 = scmp.ne.s32.totalorder %s30, %s46
      %p48 = scmp.eq.s32.totalorder %s22, 0
      %p49 = por %p47, %p48
      %s51 = sadd.s32 %s50, 1
      %p54 = scmp.eq.s32.totalorder %s16, 1
      %p55 = scmp.ne.s32.totalorder %s50, %s52
      %p56 = scmp.eq.s32.totalorder %s16, 0
      %p57 = por %p55, %p56
      %p58 = scmp.ne.s32.totalorder %s50, %s52
      %p59 = scmp.eq.s32.totalorder %s21, 1
      %p60 = por %p58, %p59
      %p61 = scmp.ne.s32.totalorder %s52, %s53
      %p62 = scmp.eq.s32.totalorder %s21, 0
      %p63 = por %p61, %p62
      %p64 = scmp.ne.s32.totalorder %s52, %s53
      %p65 = scmp.eq.s32.totalorder %s22, 1
      %p66 = por %p64, %p65
      %p68 = scmp.ne.s32.totalorder %s53, %s67
      %p69 = scmp.eq.s32.totalorder %s22, 0
      %p70 = por %p68, %p69
      %s72 = sadd.s32 %s71, 1
      %p75 = scmp.eq.s32.totalorder %s16, 1
      %p76 = scmp.ne.s32.totalorder %s71, %s73
      %p77 = scmp.eq.s32.totalorder %s16, 0
      %p78 = por %p76, %p77
      %p79 = scmp.ne.s32.totalorder %s71, %s73
      %p80 = scmp.eq.s32.totalorder %s21, 1
      %p81 = por %p79, %p80
      %p82 = scmp.ne.s32.totalorder %s73, %s74
      %p83 = scmp.eq.s32.totalorder %s21, 0
      %p84 = por %p82, %p83
      %p85 = scmp.ne.s32.totalorder %s73, %s74
      %p86 = scmp.eq.s32.totalorder %s22, 1
      %p87 = por %p85, %p86
      %p89 = scmp.ne.s32.totalorder %s74, %s88
      %p90 = scmp.eq.s32.totalorder %s22, 0
      %p91 = por %p89, %p90
      %s93 = sadd.s32 %s92, 1
      %p96 = scmp.eq.s32.totalorder %s16, 1
      %p97 = scmp.ne.s32.totalorder %s92, %s94
      %p98 = scmp.eq.s32.totalorder %s16, 0
      %p99 = por %p97, %p98
      %p100 = scmp.ne.s32.totalorder %s92, %s94
      %p101 = scmp.eq.s32.totalorder %s21, 1
      %p102 = por %p100, %p101
      %p103 = scmp.ne.s32.totalorder %s94, %s95
      %p104 = scmp.eq.s32.totalorder %s21, 0
      %p105 = por %p103, %p104
      %p106 = scmp.ne.s32.totalorder %s94, %s95
      %p107 = scmp.eq.s32.totalorder %s22, 1
      %p108 = por %p106, %p107
      %p110 = scmp.ne.s32.totalorder %s95, %s109
      %p111 = scmp.eq.s32.totalorder %s22, 0
      %p112 = por %p110, %p111
      %s114 = sadd.s32 %s113, 1
      %p117 = scmp.eq.s32.totalorder %s16, 1
      %p118 = scmp.ne.s32.totalorder %s113, %s115
      %p119 = scmp.eq.s32.totalorder %s16, 0
      %p120 = por %p118, %p119
      %p121 = scmp.ne.s32.totalorder %s113, %s115
      %p122 = scmp.eq.s32.totalorder %s21, 1
      %p123 = por %p121, %p122
      %p124 = scmp.ne.s32.totalorder %s115, %s116
      %p125 = scmp.eq.s32.totalorder %s21, 0
      %p126 = por %p124, %p125
      %p127 = scmp.ne.s32.totalorder %s115, %s116
      %p128 = scmp.eq.s32.totalorder %s22, 1
      %p129 = por %p127, %p128
      %p131 = scmp.ne.s32.totalorder %s116, %s130
      %p132 = scmp.eq.s32.totalorder %s22, 0
      %p133 = por %p131, %p132
      %s135 = sadd.s32 %s134, 1
      %p138 = scmp.eq.s32.totalorder %s16, 1
      %p139 = scmp.ne.s32.totalorder %s134, %s136
      %p140 = scmp.eq.s32.totalorder %s16, 0
      %p141 = por %p139, %p140
      %p142 = scmp.ne.s32.totalorder %s134, %s136
      %p143 = scmp.eq.s32.totalorder %s21, 1
      %p144 = por %p142, %p143
      %p145 = scmp.ne.s32.totalorder %s136, %s137
      %p146 = scmp.eq.s32.totalorder %s21, 0
      %p147 = por %p145, %p146
      %p148 = scmp.ne.s32.totalorder %s136, %s137
      %p149 = scmp.eq.s32.totalorder %s22, 1
      %p150 = por %p148, %p149
      %p152 = scmp.ne.s32.totalorder %s137, %s151
      %p153 = scmp.eq.s32.totalorder %s22, 0
      %p154 = por %p152, %p153
      %s155 = ssub.s32 %s16, %s23
      %p156 = scmp.eq.s32.totalorder %s155, 0
      %s158 = sadd.s32 %s157, 1
      %s159 = scalar_select %p156, %s157, %s158
      %p162 = pneg %p156
      %p163 = scmp.eq.s32.totalorder %s16, 1
      %p164 = por %p162, %p163
      %p165 = scmp.ne.s32.totalorder %s157, %s160
      %p166 = scmp.eq.s32.totalorder %s16, 0
      %p167 = por %p165, %p166
      %p168 = scmp.ne.s32.totalorder %s157, %s160
      %p169 = scmp.eq.s32.totalorder %s21, 1
      %p170 = por %p168, %p169
      %p171 = scmp.ne.s32.totalorder %s160, %s161
      %p172 = scmp.eq.s32.totalorder %s21, 0
      %p173 = por %p171, %p172
      %p174 = scmp.ne.s32.totalorder %s160, %s161
      %p175 = scmp.eq.s32.totalorder %s22, 1
      %p176 = por %p174, %p175
      %p178 = scmp.ne.s32.totalorder %s161, %s177
      %p179 = scmp.eq.s32.totalorder %s22, 0
      %p180 = por %p178, %p179
      %p181 = scmp.le.s32.totalorder 1, %s16
      %p182 = scmp.lt.s32.totalorder %s16, 3
      %p183 = pnand %p181, %p182
      %p184 = pneg %p183
      // Predicated region
      $region9: #{tpu_custom_call.1} parent=5 // pred_check
        _
      $region10: #{tpu_custom_call.1} parent=5 // pred_check_branch
        %186 = sbr.rel (%p183) target = $region12
      $region11: #{tpu_custom_call.1} parent=5 // pred_region
        %s187 = ssub.s32 %s16, 1
        // Predicated region
        $region13: #{tpu_custom_call.1} parent=11 // pred_check
          %p188 = pneg %p63
        $region14: #{tpu_custom_call.1} parent=11 // pred_check_branch
          %190 = sbr.rel (%p188) target = $region16
        $region15: #{tpu_custom_call.1} parent=11 // pred_region
          _
        $region16: #{tpu_custom_call.1} parent=11 // pred_fallthru
          _
        // Predicated region
        $region17: #{tpu_custom_call.1} parent=11 // pred_check
          %p191 = pneg %p84
        $region18: #{tpu_custom_call.1} parent=11 // pred_check_branch
          %193 = sbr.rel (%p191) target = $region20
        $region19: #{tpu_custom_call.1} parent=11 // pred_region
          _
        $region20: #{tpu_custom_call.1} parent=11 // pred_fallthru
          _
        // Predicated region
        $region21: #{tpu_custom_call.1} parent=11 // pred_check
          %p194 = pneg %p105
        $region22: #{tpu_custom_call.1} parent=11 // pred_check_branch
          %196 = sbr.rel (%p194) target = $region24
        $region23: #{tpu_custom_call.1} parent=11 // pred_region
          %s198 = ssub.s32 256, 256
          %199 = vsyncadd [#allocation3], %s198
          %s200 = sshll.u32 [#allocation2], 4
          %s201 = int_to_ptr.vmem [resolvable:$true] %s200
          %206 = dma.hbm_to_vmem [thread:$0]  %s3, 256, %s201, [#allocation3], 128, 128, 8
        $region24: #{tpu_custom_call.1} parent=11 // pred_fallthru
          _
        // Predicated region
        $region25: #{tpu_custom_call.1} parent=11 // pred_check
          %p207 = pneg %p126
        $region26: #{tpu_custom_call.1} parent=11 // pred_check_branch
          %209 = sbr.rel (%p207) target = $region28
        $region27: #{tpu_custom_call.1} parent=11 // pred_region
          _
        $region28: #{tpu_custom_call.1} parent=11 // pred_fallthru
          _
        // Predicated region
        $region29: #{tpu_custom_call.1} parent=11 // pred_check
          %p210 = pneg %p147
        $region30: #{tpu_custom_call.1} parent=11 // pred_check_branch
          %212 = sbr.rel (%p210) target = $region32
        $region31: #{tpu_custom_call.1} parent=11 // pred_region
          _
        $region32: #{tpu_custom_call.1} parent=11 // pred_fallthru
          _
      $region12: #{tpu_custom_call.1} parent=5 // pred_fallthru
        _
      %p213 = scmp.lt.s32.totalorder %s16, 2
      // Predicated region
      $region33: #{tpu_custom_call.1} parent=5 // pred_check
        %p214 = pneg %p213
      $region34: #{tpu_custom_call.1} parent=5 // pred_check_branch
        %216 = sbr.rel (%p214) target = $region36
      $region35: #{tpu_custom_call.1} parent=5 // pred_region
        // Predicated region
        $region37: #{tpu_custom_call.1} parent=35 // pred_check
          %p217 = pneg %p36
        $region38: #{tpu_custom_call.1} parent=35 // pred_check_branch
          %219 = sbr.rel (%p217) target = $region40
        $region39: #{tpu_custom_call.1} parent=35 // pred_region
          %p220 = scmp.lt.s32.totalorder %s16, 1
          %s221 = scalar_select %p220, %s16, 1
          %s222 = smul.addr %s221, 2
          %s223 = smul.addr %s222, 4
          %s224 = scalar_lea.vmem %s0, %s223
        $region40: #{tpu_custom_call.1} parent=35 // pred_fallthru
          _
      $region36: #{tpu_custom_call.1} parent=5 // pred_fallthru
        _
      %p225 = scmp.le.s32.totalorder 1, %s16
      %p226 = scmp.lt.s32.totalorder %s16, 3
      %p227 = pnand %p225, %p226
      %p228 = pneg %p227
      // Predicated region
      $region41: #{tpu_custom_call.1} parent=5 // pred_check
        _
      $region42: #{tpu_custom_call.1} parent=5 // pred_check_branch
        %230 = sbr.rel (%p227) target = $region44
      $region43: #{tpu_custom_call.1} parent=5 // pred_region
        %s231 = ssub.s32 %s16, 1
        // Predicated region
        $region45: #{tpu_custom_call.1} parent=43 // pred_check
          %p232 = pneg %p105
        $region46: #{tpu_custom_call.1} parent=43 // pred_check_branch
          %234 = sbr.rel (%p232) target = $region48
        $region47: #{tpu_custom_call.1} parent=43 // pred_region
          %235 = dma.done [#allocation3], 256
        $region48: #{tpu_custom_call.1} parent=43 // pred_fallthru
          _
        %p236 = scmp.lt.s32.totalorder %s21, 1
        %s237 = scalar_select %p236, %s21, 1
        %s238 = smul.addr %s237, 2
        %s239 = smul.addr %s238, 4
        %s240 = scalar_lea.vmem %s0, %s239
        %p241 = pneg %p42
        %p242 = pneg %p39
        %p243 = pneg %p63
        %p244 = pneg %p60
        %p245 = pneg %p84
        %p246 = pneg %p81
        %p247 = pneg %p105
        %p248 = pneg %p102
        %p249 = pneg %p126
        %p250 = pneg %p123
        %p251 = pneg %p147
        %p252 = pneg %p144
        %p253 = pneg %p173
        %p254 = pneg %p170
        %s255 = sand.u32 %s160, 1
        %s256 = scalar_lea.sflag [#allocation4], %s255
        %s257 = sand.u32 %s160, 1
        %s258 = smul.addr %s257, 32
        %s259 = scalar_lea.vmem [#allocation5], %s258
        %p260 = scmp.lt.s32.totalorder %s21, 1
        %s261 = scalar_select %p260, %s21, 1
        %s262 = smul.addr %s261, 2
        %s263 = smul.addr %s262, 4
        %s264 = scalar_lea.vmem %s0, %s263
        %v265 = vld [vmem:[%s264] sm:$0xff]
        %v266 = vld [vmem:[%s1] sm:$0xf]
        %v267 = vld [vmem:[%s2] sm:$0xf]
        %269 = vset.pattern.permute.xlu0 0
        %270 = vperm.xlu0 %269, %v267
        %v271 = vpop.permute.xlu0 %270
        %v274 = vcombine.high %v265, %v265
        %vm275 = vcmask 31744
        %v277 = vsel %vm275, %v266, 0
        %vm279 = vcmask 1043456
        %v280 = vsel %vm279, %v265, 0
        %v282 = vsel %vm279, %v274, 0
        %284 = vmatprep.subr.mxu0 0.0
        %285 = vmatpush1.msra.mxu0 0.0
        %286 = vmatprep.subr.mxu0 0.0
        %287 = vmatpush1.msra.mxu0 0.0
        %288 = vmatprep.subr.mxu0 0.0
        %289 = vmatpush1.msra.mxu0 0.0
        %290 = vmatprep.subr.mxu0 0.0
        %291 = vmatpush1.msra.mxu0 0.0
        %292 = vmatprep.subr.mxu0 0.0
        %293 = vmatpush1.msra.mxu0 0.0
        %294 = vmatprep.subr.mxu0 0.0
        %295 = vmatpush1.msra.mxu0 0.0
        %296 = vmatprep.subr.mxu0 0.0
        %297 = vmatpush1.msra.mxu0 0.0
        %298 = vmatprep.subr.mxu0 0.0
        %299 = vmatpush1.msra.mxu0 0.0
        %300 = vmatprep.subr.mxu0 0.0
        %301 = vmatpush1.msra.mxu0 0.0
        %302 = vmatprep.subr.mxu0 0.0
        %303 = vmatpush1.msra.mxu0 0.0
        %304 = vmatprep.subr.mxu0 0.0
        %305 = vmatpush1.msra.mxu0 0.0
        %306 = vmatprep.subr.mxu0 0.0
        %307 = vmatpush1.msra.mxu0 0.0
        %308 = vmatprep.subr.mxu0 0.0
        %309 = vmatpush1.msra.mxu0 0.0
        %310 = vmatprep.subr.mxu0 0.0
        %311 = vmatpush1.msra.mxu0 0.0
        %312 = vmatprep.subr.mxu0 0.0
        %313 = vmatpush1.msra.mxu0 0.0
        %314 = vmatprep.subr.mxu0 %v282
        %315 = vmatpush1.msra.mxu0 %v280
        %316 = vmatprep.subr.mxu0 0.0
        %317 = vmatpush2.msra.mxu0 0.0
        %318 = vmatprep.subr.mxu0 0.0
        %319 = vmatpush2.msra.mxu0 0.0
        %320 = vmatprep.subr.mxu0 0.0
        %321 = vmatpush2.msra.mxu0 0.0
        %322 = vmatprep.subr.mxu0 0.0
        %323 = vmatpush2.msra.mxu0 0.0
        %324 = vmatprep.subr.mxu0 0.0
        %325 = vmatpush2.msra.mxu0 0.0
        %326 = vmatprep.subr.mxu0 0.0
        %327 = vmatpush2.msra.mxu0 0.0
        %328 = vmatprep.subr.mxu0 0.0
        %329 = vmatpush2.msra.mxu0 0.0
        %330 = vmatprep.subr.mxu0 0.0
        %331 = vmatpush2.msra.mxu0 0.0
        %332 = vmatprep.subr.mxu0 0.0
        %333 = vmatpush2.msra.mxu0 0.0
        %334 = vmatprep.subr.mxu0 0.0
        %335 = vmatpush2.msra.mxu0 0.0
        %336 = vmatprep.subr.mxu0 0.0
        %337 = vmatpush2.msra.mxu0 0.0
        %338 = vmatprep.subr.mxu0 0.0
        %339 = vmatpush2.msra.mxu0 0.0
        %340 = vmatprep.subr.mxu0 0.0
        %341 = vmatpush2.msra.mxu0 0.0
        %342 = vmatprep.subr.mxu0 0.0
        %343 = vmatpush2.msra.mxu0 0.0
        %344 = vmatprep.subr.mxu0 0.0
        %345 = vmatpush2.msra.mxu0 0.0
        %346 = vmatprep.subr.mxu0 0.0
        %347 = vmatpush2.msra.mxu0 0.0
        %348 = vmatprep.mubr.f32.mxu0 0.0
        %349 = vmatmul.mubr.f32.gmra.mxu0 %v277
        %v350 = vpop.f32.mrf.mxu0
        %v351 = vadd.f32 %v271, %v350
        %v352 = vpop.f32.mrf.mxu0
        %v353 = vadd.f32 %v271, %v352
        %354 = vdwg.mxu0
        %v355 = vmax.f32 %v351, 0.0
        %v356 = vmax.f32 %v353, 0.0
        %359 = vrot.lane.b32.xlu0 %v355, 17
        %v360 = vpop.permute.xlu0 %359
        %361 = vrot.lane.b32.xlu0 %v356, 17
        %v362 = vpop.permute.xlu0 %361
        %vm363 = vcmask 138240
        %v364 = vsel %vm363, %v360, %v362
        %v368 = vsel %vm363, 0.0, %v360
        %v369 = vsel %vm363, %v362, 0.0
        %v370 = vld [vmem:[%s5] ss:$2 sm:$0x3]
        %s371 = scalar_lea.vmem %s5, 1
        %v372 = vld [vmem:[%s371] ss:$2 sm:$0x3]
        %v374 = vlaneseq
        %v375 = vshrl.u32 %v374, 7
        %v376 = vsub.s32 0, %v375
        %v377 = vrot.slane %v370, %v376
        %v378 = vlaneseq
        %v379 = vshrl.u32 %v378, 7
        %v380 = vsub.s32 1, %v379
        %v381 = vrot.slane %v370, %v380
        %v384 = vmul.f32 %v368, %v377
        %v385 = vmul.f32 %v364, %v381
        %v387 = vlaneseq
        %v388 = vshrl.u32 %v387, 7
        %v389 = vsub.s32 0, %v388
        %v390 = vrot.slane %v372, %v389
        %v391 = vlaneseq
        %v392 = vshrl.u32 %v391, 7
        %v393 = vsub.s32 1, %v392
        %v394 = vrot.slane %v372, %v393
        %395 = vrot.lane.b32.xlu0 %v390, 2
        %v396 = vpop.permute.xlu0 %395
        %397 = vrot.lane.b32.xlu0 %v394, 2
        %v398 = vpop.permute.xlu0 %397
        %vm399 = vcmask 15360
        %v400 = vsel %vm399, %v396, %v398
        %v404 = vmul.f32 %v368, %v396
        %v405 = vmul.f32 %v364, %v400
        %v406 = vmul.f32 %v369, %v398
        %407 = vrot.lane.b32.xlu0 %v377, 16
        %v408 = vpop.permute.xlu0 %407
        %409 = vrot.lane.b32.xlu0 %v381, 16
        %v410 = vpop.permute.xlu0 %409
        %vm411 = vcmask 130048
        %v412 = vsel %vm411, %v408, %v410
        %v416 = vmul.f32 %v368, %v408
        %v417 = vmul.f32 %v364, %v412
        %v418 = vmul.f32 %v369, %v410
        %419 = vrot.lane.b32.xlu0 %v390, 18
        %v420 = vpop.permute.xlu0 %419
        %421 = vrot.lane.b32.xlu0 %v394, 18
        %v422 = vpop.permute.xlu0 %421
        %vm423 = vcmask 146432
        %v424 = vsel %vm423, %v420, %v422
        %v428 = vmul.f32 %v368, %v420
        %v429 = vmul.f32 %v364, %v424
        %v430 = vmul.f32 %v369, %v422
        %431 = vrot.lane.b32.xlu0 %v377, 32
        %v432 = vpop.permute.xlu0 %431
        %433 = vrot.lane.b32.xlu0 %v381, 32
        %v434 = vpop.permute.xlu0 %433
        %vm435 = vcmask 261120
        %v436 = vsel %vm435, %v432, %v434
        %v440 = vmul.f32 %v368, %v432
        %v441 = vmul.f32 %v364, %v436
        %v442 = vmul.f32 %v369, %v434
        %443 = vrot.lane.b32.xlu0 %v390, 34
        %v444 = vpop.permute.xlu0 %443
        %445 = vrot.lane.b32.xlu0 %v394, 34
        %v446 = vpop.permute.xlu0 %445
        %vm447 = vcmask 277504
        %v448 = vsel %vm447, %v444, %v446
        %v452 = vmul.f32 %v368, %v444
        %v453 = vmul.f32 %v364, %v448
        %v454 = vmul.f32 %v369, %v446
        %v457 = vrot.slane %v384, 4
        %v458 = vrot.slane %v385, 4
        %463 = vrot.lane.b32.xlu0 %v368, 127
        %v464 = vpop.permute.xlu0 %463
        %465 = vrot.lane.b32.xlu0 %v364, 127
        %v466 = vpop.permute.xlu0 %465
        %467 = vrot.lane.b32.xlu0 %v369, 127
        %v468 = vpop.permute.xlu0 %467
        %vm469 = vcmask 1039360
        %v470 = vsel %vm469, %v464, %v466
        %v471 = vsel %vm469, %v466, %v468
        %v477 = vrot.slane %v404, 4
        %v478 = vrot.slane %v405, 4
        %v479 = vrot.slane %v406, 4
        %480 = vrot.lane.b32.xlu0 %v477, 126
        %v481 = vpop.permute.xlu0 %480
        %482 = vrot.lane.b32.xlu0 %v478, 126
        %v483 = vpop.permute.xlu0 %482
        %484 = vrot.lane.b32.xlu0 %v479, 126
        %v485 = vpop.permute.xlu0 %484
        %vm486 = vcmask 1031168
        %v487 = vsel %vm486, %v481, %v483
        %v488 = vsel %vm486, %v483, %v485
        %494 = vrot.lane.b32.xlu0 %v416, 112
        %v495 = vpop.permute.xlu0 %494
        %496 = vrot.lane.b32.xlu0 %v417, 112
        %v497 = vpop.permute.xlu0 %496
        %498 = vrot.lane.b32.xlu0 %v418, 112
        %v499 = vpop.permute.xlu0 %498
        %vm500 = vcmask 916480
        %v501 = vsel %vm500, %v495, %v497
        %v502 = vsel %vm500, %v497, %v499
        %v508 = vrot.slane %v428, 4
        %v509 = vrot.slane %v429, 4
        %v510 = vrot.slane %v430, 4
        %511 = vrot.lane.b32.xlu0 %v508, 110
        %v512 = vpop.permute.xlu0 %511
        %513 = vrot.lane.b32.xlu0 %v509, 110
        %v514 = vpop.permute.xlu0 %513
        %515 = vrot.lane.b32.xlu0 %v510, 110
        %v516 = vpop.permute.xlu0 %515
        %vm517 = vcmask 900096
        %v518 = vsel %vm517, %v512, %v514
        %v519 = vsel %vm517, %v514, %v516
        %525 = vrot.lane.b32.xlu0 %v440, 96
        %v526 = vpop.permute.xlu0 %525
        %527 = vrot.lane.b32.xlu0 %v441, 96
        %v528 = vpop.permute.xlu0 %527
        %529 = vrot.lane.b32.xlu0 %v442, 96
        %v530 = vpop.permute.xlu0 %529
        %vm531 = vcmask 785408
        %v532 = vsel %vm531, %v526, %v528
        %v533 = vsel %vm531, %v528, %v530
        %v536 = vrot.slane %v368, 4
        %v537 = vrot.slane %v364, 4
        %v538 = vrot.slane %v369, 4
        %539 = vrot.lane.b32.xlu0 %v536, 95
        %v540 = vpop.permute.xlu0 %539
        %541 = vrot.lane.b32.xlu0 %v537, 95
        %v542 = vpop.permute.xlu0 %541
        %543 = vrot.lane.b32.xlu0 %v538, 95
        %v544 = vpop.permute.xlu0 %543
        %vm545 = vcmask 777216
        %v546 = vsel %vm545, %v540, %v542
        %v547 = vsel %vm545, %v542, %v544
        %553 = vrot.lane.b32.xlu0 %v452, 94
        %v554 = vpop.permute.xlu0 %553
        %555 = vrot.lane.b32.xlu0 %v453, 94
        %v556 = vpop.permute.xlu0 %555
        %557 = vrot.lane.b32.xlu0 %v454, 94
        %v558 = vpop.permute.xlu0 %557
        %vm559 = vcmask 769024
        %v560 = vsel %vm559, %v554, %v556
        %v561 = vsel %vm559, %v556, %v558
        %v562 = vsel %vm279, %v355, %v457
        %v563 = vsel %vm279, %v356, %v458
        %v564 = vsel %vm279, %v470, %v487
        %v565 = vsel %vm279, %v471, %v488
        %v566 = vsel %vm279, %v501, %v518
        %v567 = vsel %vm279, %v502, %v519
        %v568 = vsel %vm279, %v532, %v546
        %v569 = vsel %vm279, %v533, %v547
        %v570 = vld [vmem:[#allocation2] sm:$0xff]
        %v571 = vld [vmem:[#allocation2 + $0x8] sm:$0xff]
        %v572 = vld [vmem:[%s4] sm:$0xff]
        %v573 = vld [vmem:[%s4 + $0x8] sm:$0xff]
        %575 = vset.pattern.permute.xlu0 0
        %576 = vperm.xlu0 %575, %v572
        %v577 = vpop.permute.xlu0 %576
        %580 = vset.pattern.permute.xlu0 0
        %581 = vperm.xlu0 %580, %v573
        %v582 = vpop.permute.xlu0 %581
        %vm584 = vcmask 293888
        %v586 = vsel %vm584, %v570, 0
        %v589 = vsel %vm584, %v571, 0
        %v591 = vsel %vm279, %v560, 0
        %v593 = vsel %vm279, %v561, 0
        %595 = vmatprep.subr.mxu0 0.0
        %596 = vmatpush1.msra.mxu0 0.0
        %597 = vmatprep.subr.mxu0 0.0
        %598 = vmatpush1.msra.mxu0 0.0
        %599 = vmatprep.subr.mxu0 0.0
        %600 = vmatpush1.msra.mxu0 0.0
        %601 = vmatprep.subr.mxu0 0.0
        %602 = vmatpush1.msra.mxu0 0.0
        %603 = vmatprep.subr.mxu0 0.0
        %604 = vmatpush1.msra.mxu0 0.0
        %605 = vmatprep.subr.mxu0 0.0
        %606 = vmatpush1.msra.mxu0 0.0
        %607 = vmatprep.subr.mxu0 0.0
        %608 = vmatpush1.msra.mxu0 0.0
        %609 = vmatprep.subr.mxu0 0.0
        %610 = vmatpush1.msra.mxu0 0.0
        %611 = vmatprep.subr.mxu0 0.0
        %612 = vmatpush1.msra.mxu0 0.0
        %613 = vmatprep.subr.mxu0 0.0
        %614 = vmatpush1.msra.mxu0 0.0
        %615 = vmatprep.subr.mxu0 0.0
        %616 = vmatpush1.msra.mxu0 0.0
        %617 = vmatprep.subr.mxu0 %v593
        %618 = vmatpush1.msra.mxu0 %v591
        %619 = vmatprep.subr.mxu0 %v569
        %620 = vmatpush1.msra.mxu0 %v568
        %621 = vmatprep.subr.mxu0 %v567
        %622 = vmatpush1.msra.mxu0 %v566
        %623 = vmatprep.subr.mxu0 %v565
        %624 = vmatpush1.msra.mxu0 %v564
        %625 = vmatprep.subr.mxu0 %v563
        %626 = vmatpush1.msra.mxu0 %v562
        %627 = vmatprep.subr.mxu0 0.0
        %628 = vmatpush2.msra.mxu0 0.0
        %629 = vmatprep.subr.mxu0 0.0
        %630 = vmatpush2.msra.mxu0 0.0
        %631 = vmatprep.subr.mxu0 0.0
        %632 = vmatpush2.msra.mxu0 0.0
        %633 = vmatprep.subr.mxu0 0.0
        %634 = vmatpush2.msra.mxu0 0.0
        %635 = vmatprep.subr.mxu0 0.0
        %636 = vmatpush2.msra.mxu0 0.0
        %637 = vmatprep.subr.mxu0 0.0
        %638 = vmatpush2.msra.mxu0 0.0
        %639 = vmatprep.subr.mxu0 0.0
        %640 = vmatpush2.msra.mxu0 0.0
        %641 = vmatprep.subr.mxu0 0.0
        %642 = vmatpush2.msra.mxu0 0.0
        %643 = vmatprep.subr.mxu0 0.0
        %644 = vmatpush2.msra.mxu0 0.0
        %645 = vmatprep.subr.mxu0 0.0
        %646 = vmatpush2.msra.mxu0 0.0
        %647 = vmatprep.subr.mxu0 0.0
        %648 = vmatpush2.msra.mxu0 0.0
        %649 = vmatprep.subr.mxu0 0.0
        %650 = vmatpush2.msra.mxu0 0.0
        %651 = vmatprep.subr.mxu0 0.0
        %652 = vmatpush2.msra.mxu0 0.0
        %653 = vmatprep.subr.mxu0 0.0
        %654 = vmatpush2.msra.mxu0 0.0
        %655 = vmatprep.subr.mxu0 0.0
        %656 = vmatpush2.msra.mxu0 0.0
        %657 = vmatprep.subr.mxu0 0.0
        %658 = vmatpush2.msra.mxu0 0.0
        %659 = vmatprep.mubr.f32.mxu0 0.0
        %660 = vmatmul.mubr.f32.gmra.mxu0 %v586
        %v661 = vpop.f32.mrf.mxu0
        %v662 = vadd.f32 %v577, %v661
        %v663 = vpop.f32.mrf.mxu0
        %v664 = vadd.f32 %v577, %v663
        %665 = vmatprep.mubr.f32.mxu0 0.0
        %666 = vmatmul.mubr.f32.gmra.mxu0 %v589
        %v667 = vpop.f32.mrf.mxu0
        %v668 = vadd.f32 %v582, %v667
        %v669 = vpop.f32.mrf.mxu0
        %v670 = vadd.f32 %v582, %v669
        %671 = vdwg.mxu0
        %v672 = vmax.f32 %v662, 0.0
        %v673 = vmax.f32 %v664, 0.0
        %v674 = vmax.f32 %v668, 0.0
        %v675 = vmax.f32 %v670, 0.0
        %676 = vst [vmem:[%s259] sm:$0xff] %v672
        %677 = vst [vmem:[%s259 + $0x8] sm:$0xff] %v673
        %678 = vst [vmem:[%s259 + $0x10] sm:$0xff] %v674
        %679 = vst [vmem:[%s259 + $0x18] sm:$0xff] %v675
        %s680 = sand.u32 %s160, 1
        %s681 = scalar_lea.sflag [#allocation4], %s680
        %s682 = sand.u32 %s160, 1
        %s683 = smul.addr %s682, 32
        %s684 = scalar_lea.vmem [#allocation5], %s683
        // Predicated region
        $region49: #{tpu_custom_call.1} parent=43 // pred_check
          %p685 = pneg %p170
        $region50: #{tpu_custom_call.1} parent=43 // pred_check_branch
          %687 = sbr.rel (%p685) target = $region52
        $region51: #{tpu_custom_call.1} parent=43 // pred_region
          %s689 = ssub.s32 512, 512
          %690 = vsyncadd %s681, %s689
          %s691 = smul.addr %s21, 4
          %s692 = smul.addr %s691, 128
          %s693 = scalar_lea.hbm %s6, %s692
          %s694 = sshll.u32 %s684, 4
          %s695 = int_to_ptr.vmem [resolvable:$true] %s694
          %700 = dma.vmem_to_hbm [thread:$0]  %s695, 512, %s693, %s681, 256, 256, 16
        $region52: #{tpu_custom_call.1} parent=43 // pred_fallthru
          _
      $region44: #{tpu_custom_call.1} parent=5 // pred_fallthru
        _
      %p701 = scmp.le.s32.totalorder 2, %s16
      // Predicated region
      $region53: #{tpu_custom_call.1} parent=5 // pred_check
        %p702 = pneg %p701
      $region54: #{tpu_custom_call.1} parent=5 // pred_check_branch
        %704 = sbr.rel (%p702) target = $region56
      $region55: #{tpu_custom_call.1} parent=5 // pred_region
        %s705 = ssub.s32 %s16, 2
        // Predicated region
        $region57: #{tpu_custom_call.1} parent=55 // pred_check
          %p706 = pneg %p176
        $region58: #{tpu_custom_call.1} parent=55 // pred_check_branch
          %708 = sbr.rel (%p706) target = $region60
        $region59: #{tpu_custom_call.1} parent=55 // pred_region
          %s709 = sand.u32 %s161, 1
          %s710 = scalar_lea.sflag [#allocation4], %s709
          %s711 = sand.u32 %s161, 1
          %s712 = smul.addr %s711, 32
          %s713 = scalar_lea.vmem [#allocation5], %s712
          %714 = dma.done %s710, 512
        $region60: #{tpu_custom_call.1} parent=55 // pred_fallthru
          _
      $region56: #{tpu_custom_call.1} parent=5 // pred_fallthru
        _
    $region6: #{tpu_custom_call.1} parent=1 // loop_footer
      %s20 = sadd.s32 1, %s16
    $region7: #{tpu_custom_call.1} parent=1 // loop_footer_branch
      %15 = sbr.rel target = $region3
    $region8: #{tpu_custom_call.1} parent=1 // loop_exit
      _
    %715 = vsyncpa [#allocation3], 1
    %s716 = scalar_lea.sflag [#allocation3], 1
    %717 = vsyncpa %s716, 1
    %718 = vsyncpa [#allocation4], 1
    %s719 = scalar_lea.sflag [#allocation4], 1
    %720 = vsyncpa %s719, 1

</llo_original>
